<compile_context>
chip_gen: v5e
topology: v5e:2x2
jax: 0.10.0
libtpu: 0.0.40
codegen_flags: <defaults>
</compile_context>

<pallas_src>
import functools

import jax
import jax.numpy as jnp
from jax.experimental import pallas as pl
from jax.experimental.pallas import tpu as pltpu

HIDDEN = 256
OUT_PAD = 128  # lane-dense padded output width (true out_features = 1)


def _elu(x):
    # ELU(alpha=1): x if x > 0 else exp(x) - 1   (f32 math on VPU/EUP)
    return jnp.where(x > 0, x, jnp.exp(jnp.minimum(x, 0.0)) - 1.0)


def critic_kernel(s_ref, a_ref, w1s_ref, w1a_ref, b1_ref, w2_ref, b2_ref,
                  w3_ref, b3_ref, o_ref):
    # Layer 1: cat([s, a]) @ W1 + b1  ==  s @ W1[:S] + a @ W1[S:] + b1
    h1 = (jnp.dot(s_ref[...], w1s_ref[...], preferred_element_type=jnp.float32)
          + jnp.dot(a_ref[...], w1a_ref[...], preferred_element_type=jnp.float32)
          + b1_ref[...])
    h1 = _elu(h1)

    h2 = jnp.dot(h1, w2_ref[...], preferred_element_type=jnp.float32) + b2_ref[...]
    h2 = _elu(h2)

    # Output head (padded to 128 lanes; only column 0 is the real Q value).
    q = jnp.dot(h2, w3_ref[...], preferred_element_type=jnp.float32) + b3_ref[...]
    o_ref[...] = q.astype(o_ref.dtype)


@functools.partial(jax.jit, static_argnames=("block_m",))
def critic_forward(state, action, w1, b1, w2, b2, w3, b3, *, block_m=128):
    """Fused 3-layer critic MLP in a single Pallas kernel, tiled over batch."""
    B, S = state.shape
    _, A = action.shape
    assert w1.shape[0] == S + A

    # Clamp the batch tile: multiple of 8, no larger than the rounded-up batch.
    block_m = max(8, min(block_m, pl.cdiv(B, 8) * 8))

    # Fused-concat weight split (tiny static slices on the weights).
    w1s = w1[:S]
    w1a = w1[S:]

    # Lane-dense output head: zero-pad out_features 1 -> OUT_PAD.
    w3p = jnp.pad(w3, ((0, 0), (0, OUT_PAD - w3.shape[1])))
    b3p = jnp.pad(b3, ((0, 0), (0, OUT_PAD - b3.shape[1])))

    grid = (pl.cdiv(B, block_m),)

    out = pl.pallas_call(
        critic_kernel,
        out_shape=jax.ShapeDtypeStruct((B, OUT_PAD), state.dtype),
        grid_spec=pltpu.PrefetchScalarGridSpec(
            num_scalar_prefetch=0,
            grid=grid,
            in_specs=[
                pl.BlockSpec((block_m, S), lambda i: (i, 0)),       # state tile
                pl.BlockSpec((block_m, A), lambda i: (i, 0)),       # action tile
                pl.BlockSpec((S, HIDDEN), lambda i: (0, 0)),        # W1[:S]
                pl.BlockSpec((A, HIDDEN), lambda i: (0, 0)),        # W1[S:]
                pl.BlockSpec((1, HIDDEN), lambda i: (0, 0)),        # b1
                pl.BlockSpec((HIDDEN, HIDDEN), lambda i: (0, 0)),   # W2
                pl.BlockSpec((1, HIDDEN), lambda i: (0, 0)),        # b2
                pl.BlockSpec((HIDDEN, OUT_PAD), lambda i: (0, 0)),  # W3 (padded)
                pl.BlockSpec((1, OUT_PAD), lambda i: (0, 0)),       # b3 (padded)
            ],
            out_specs=pl.BlockSpec((block_m, OUT_PAD), lambda i: (i, 0)),
        ),
        compiler_params=pltpu.CompilerParams(
            dimension_semantics=("parallel",),
        ),
    )(state, action, w1s, w1a, b1, w2, b2, w3p, b3p)

    # Q-values live in column 0; matches the PyTorch `.view(-1)`.
    return out[:, 0]


def init_critic_params(key, state_dim, action_dim):
    """Deterministic init mimicking PyTorch nn.Linear default U(-1/sqrt(fan_in), +)."""
    ks = jax.random.split(key, 6)

    def linear(kw, kb, fan_in, fan_out):
        bound = 1.0 / jnp.sqrt(jnp.float32(fan_in))
        w = jax.random.uniform(kw, (fan_in, fan_out), jnp.float32, -bound, bound)
        b = jax.random.uniform(kb, (1, fan_out), jnp.float32, -bound, bound)
        return w, b

    w1, b1 = linear(ks[0], ks[1], state_dim + action_dim, HIDDEN)
    w2, b2 = linear(ks[2], ks[3], HIDDEN, HIDDEN)
    w3, b3 = linear(ks[4], ks[5], HIDDEN, 1)
    return w1, b1, w2, b2, w3, b3


def critic_ref(state, action, w1, b1, w2, b2, w3, b3):
    x = jnp.concatenate([state, action], axis=-1)
    h1 = _elu(x @ w1 + b1)
    h2 = _elu(h1 @ w2 + b2)
    return (h2 @ w3 + b3).reshape(-1)


if __name__ == "__main__":
    key = jax.random.PRNGKey(0)
    k_params, k_s1, k_a1, k_s2, k_a2 = jax.random.split(key, 5)

    state_dim, action_dim = 16, 8
    params = init_critic_params(k_params, state_dim, action_dim)

    # Small deterministic check.
    batch = 8
    state = jax.random.normal(k_s1, (batch, state_dim), jnp.float32)
    action = jax.random.normal(k_a1, (batch, action_dim), jnp.float32)

    q = critic_forward(state, action, *params)
    jax.block_until_ready(q)
    q_ref = critic_ref(state, action, *params)
    assert q.shape == (batch,)
    assert jnp.allclose(q, q_ref, atol=1e-5, rtol=1e-5)

    # Larger batch: exercises 128-row tiles, >1 grid step (megacore on v7x),
    # and a masked partial final block (300 is not a multiple of 128).
    batch2 = 300
    state2 = jax.random.normal(k_s2, (batch2, state_dim), jnp.float32)
    action2 = jax.random.normal(k_a2, (batch2, action_dim), jnp.float32)

    q2 = critic_forward(state2, action2, *params)
    jax.block_until_ready(q2)
    q2_ref = critic_ref(state2, action2, *params)
    assert q2.shape == (batch2,)
    assert jnp.allclose(q2, q2_ref, atol=1e-5, rtol=1e-5)

    print("KERNEL_OK")
</pallas_src>

<mosaic_0001>
module attributes {stable_mosaic.version = 11 : i64} {
  func.func @critic_kernel(%arg0: i32, %arg1: memref<8x16xf32, #tpu.memory_space<vmem>>, %arg2: memref<8x8xf32, #tpu.memory_space<vmem>>, %arg3: memref<16x256xf32, #tpu.memory_space<vmem>>, %arg4: memref<8x256xf32, #tpu.memory_space<vmem>>, %arg5: memref<1x256xf32, #tpu.memory_space<vmem>>, %arg6: memref<256x256xf32, #tpu.memory_space<vmem>>, %arg7: memref<1x256xf32, #tpu.memory_space<vmem>>, %arg8: memref<256x128xf32, #tpu.memory_space<vmem>>, %arg9: memref<1x128xf32, #tpu.memory_space<vmem>>, %arg10: memref<8x128xf32, #tpu.memory_space<vmem>>) attributes {dimension_semantics = [#tpu.dimension_semantics<parallel>], iteration_bounds = array<i64: 1>, scalar_prefetch = 0 : i64, scratch_operands = 0 : i64, tpu.core_type = #tpu.core_type<tc>, window_params = [{transform_indices = @transform_0, window_bounds = array<i64: 8, 16>}, {transform_indices = @transform_1, window_bounds = array<i64: 8, 8>}, {pipeline_mode = #tpu.pipeline_mode<synchronous>, transform_indices = @transform_2, window_bounds = array<i64: 16, 256>}, {pipeline_mode = #tpu.pipeline_mode<synchronous>, transform_indices = @transform_3, window_bounds = array<i64: 8, 256>}, {pipeline_mode = #tpu.pipeline_mode<synchronous>, transform_indices = @transform_4, window_bounds = array<i64: 1, 256>}, {pipeline_mode = #tpu.pipeline_mode<synchronous>, transform_indices = @transform_5, window_bounds = array<i64: 256, 256>}, {pipeline_mode = #tpu.pipeline_mode<synchronous>, transform_indices = @transform_6, window_bounds = array<i64: 1, 256>}, {pipeline_mode = #tpu.pipeline_mode<synchronous>, transform_indices = @transform_7, window_bounds = array<i64: 256, 128>}, {pipeline_mode = #tpu.pipeline_mode<synchronous>, transform_indices = @transform_8, window_bounds = array<i64: 1, 128>}, {transform_indices = @transform_9, window_bounds = array<i64: 8, 128>}]} {
    %c0 = arith.constant 0 : index
    %c0_0 = arith.constant 0 : index
    %0 = vector.load %arg1[%c0, %c0_0] : memref<8x16xf32, #tpu.memory_space<vmem>>, vector<8x16xf32>
    %c0_1 = arith.constant 0 : index
    %c0_2 = arith.constant 0 : index
    %1 = vector.load %arg3[%c0_1, %c0_2] : memref<16x256xf32, #tpu.memory_space<vmem>>, vector<16x256xf32>
    %cst = arith.constant dense<0.000000e+00> : vector<8x256xf32>
    %2 = tpu.matmul %0, %1, %cst {dimension_numbers = #tpu.dot_dimension_numbers<[1], [0], [0], [1], [0, 0, 1, 1], [], []>} : vector<8x16xf32>, vector<16x256xf32>, vector<8x256xf32> -> vector<8x256xf32>
    %c0_3 = arith.constant 0 : index
    %c0_4 = arith.constant 0 : index
    %3 = vector.load %arg2[%c0_3, %c0_4] : memref<8x8xf32, #tpu.memory_space<vmem>>, vector<8x8xf32>
    %c0_5 = arith.constant 0 : index
    %c0_6 = arith.constant 0 : index
    %4 = vector.load %arg4[%c0_5, %c0_6] : memref<8x256xf32, #tpu.memory_space<vmem>>, vector<8x256xf32>
    %cst_7 = arith.constant dense<0.000000e+00> : vector<8x256xf32>
    %5 = tpu.matmul %3, %4, %cst_7 {dimension_numbers = #tpu.dot_dimension_numbers<[1], [0], [0], [1], [0, 0, 1, 1], [], []>} : vector<8x8xf32>, vector<8x256xf32>, vector<8x256xf32> -> vector<8x256xf32>
    %6 = arith.addf %2, %5 : vector<8x256xf32>
    %c0_8 = arith.constant 0 : index
    %c0_9 = arith.constant 0 : index
    %7 = vector.load %arg5[%c0_8, %c0_9] : memref<1x256xf32, #tpu.memory_space<vmem>>, vector<1x256xf32>
    %8 = vector.broadcast %7 : vector<1x256xf32> to vector<8x256xf32>
    %9 = arith.addf %6, %8 : vector<8x256xf32>
    %cst_10 = arith.constant 0.000000e+00 : f32
    %10 = vector.broadcast %cst_10 : f32 to vector<8x256xf32>
    %11 = arith.cmpf ogt, %9, %10 : vector<8x256xf32>
    %cst_11 = arith.constant 0.000000e+00 : f32
    %12 = vector.broadcast %cst_11 : f32 to vector<8x256xf32>
    %13 = arith.minimumf %9, %12 : vector<8x256xf32>
    %14 = math.exp %13 : vector<8x256xf32>
    %cst_12 = arith.constant 1.000000e+00 : f32
    %15 = vector.broadcast %cst_12 : f32 to vector<8x256xf32>
    %16 = arith.subf %14, %15 : vector<8x256xf32>
    %17 = arith.select %11, %9, %16 : vector<8x256xi1>, vector<8x256xf32>
    %c0_13 = arith.constant 0 : index
    %c0_14 = arith.constant 0 : index
    %18 = vector.load %arg6[%c0_13, %c0_14] : memref<256x256xf32, #tpu.memory_space<vmem>>, vector<256x256xf32>
    %cst_15 = arith.constant dense<0.000000e+00> : vector<8x256xf32>
    %19 = tpu.matmul %17, %18, %cst_15 {dimension_numbers = #tpu.dot_dimension_numbers<[1], [0], [0], [1], [0, 0, 1, 1], [], []>} : vector<8x256xf32>, vector<256x256xf32>, vector<8x256xf32> -> vector<8x256xf32>
    %c0_16 = arith.constant 0 : index
    %c0_17 = arith.constant 0 : index
    %20 = vector.load %arg7[%c0_16, %c0_17] : memref<1x256xf32, #tpu.memory_space<vmem>>, vector<1x256xf32>
    %21 = vector.broadcast %20 : vector<1x256xf32> to vector<8x256xf32>
    %22 = arith.addf %19, %21 : vector<8x256xf32>
    %cst_18 = arith.constant 0.000000e+00 : f32
    %23 = vector.broadcast %cst_18 : f32 to vector<8x256xf32>
    %24 = arith.cmpf ogt, %22, %23 : vector<8x256xf32>
    %cst_19 = arith.constant 0.000000e+00 : f32
    %25 = vector.broadcast %cst_19 : f32 to vector<8x256xf32>
    %26 = arith.minimumf %22, %25 : vector<8x256xf32>
    %27 = math.exp %26 : vector<8x256xf32>
    %cst_20 = arith.constant 1.000000e+00 : f32
    %28 = vector.broadcast %cst_20 : f32 to vector<8x256xf32>
    %29 = arith.subf %27, %28 : vector<8x256xf32>
    %30 = arith.select %24, %22, %29 : vector<8x256xi1>, vector<8x256xf32>
    %c0_21 = arith.constant 0 : index
    %c0_22 = arith.constant 0 : index
    %31 = vector.load %arg8[%c0_21, %c0_22] : memref<256x128xf32, #tpu.memory_space<vmem>>, vector<256x128xf32>
    %cst_23 = arith.constant dense<0.000000e+00> : vector<8x128xf32>
    %32 = tpu.matmul %30, %31, %cst_23 {dimension_numbers = #tpu.dot_dimension_numbers<[1], [0], [0], [1], [0, 0, 1, 1], [], []>} : vector<8x256xf32>, vector<256x128xf32>, vector<8x128xf32> -> vector<8x128xf32>
    %c0_24 = arith.constant 0 : index
    %c0_25 = arith.constant 0 : index
    %33 = vector.load %arg9[%c0_24, %c0_25] : memref<1x128xf32, #tpu.memory_space<vmem>>, vector<1x128xf32>
    %34 = vector.broadcast %33 : vector<1x128xf32> to vector<8x128xf32>
    %35 = arith.addf %32, %34 : vector<8x128xf32>
    %c0_26 = arith.constant 0 : index
    %c0_27 = arith.constant 0 : index
    %36 = vector.load %arg10[%c0_26, %c0_27] : memref<8x128xf32, #tpu.memory_space<vmem>>, vector<8x128xf32>
    tpu.vector_store %arg10[%c0_26, %c0_27], %35 {strides = array<i32>} : memref<8x128xf32, #tpu.memory_space<vmem>>, vector<8x128xf32>,
    return
  }
  func.func @transform_0(%arg0: i32) -> (i32, i32) {
    %c0_i32 = arith.constant 0 : i32
    %c0_i32_0 = arith.constant 0 : i32
    return %arg0, %c0_i32 : i32, i32
  }
  func.func @transform_1(%arg0: i32) -> (i32, i32) {
    %c0_i32 = arith.constant 0 : i32
    %c0_i32_0 = arith.constant 0 : i32
    return %arg0, %c0_i32 : i32, i32
  }
  func.func @transform_2(%arg0: i32) -> (i32, i32) {
    %c0_i32 = arith.constant 0 : i32
    %c0_i32_0 = arith.constant 0 : i32
    %c0_i32_1 = arith.constant 0 : i32
    return %c0_i32, %c0_i32_0 : i32, i32
  }
  func.func @transform_3(%arg0: i32) -> (i32, i32) {
    %c0_i32 = arith.constant 0 : i32
    %c0_i32_0 = arith.constant 0 : i32
    %c0_i32_1 = arith.constant 0 : i32
    return %c0_i32, %c0_i32_0 : i32, i32
  }
  func.func @transform_4(%arg0: i32) -> (i32, i32) {
    %c0_i32 = arith.constant 0 : i32
    %c0_i32_0 = arith.constant 0 : i32
    %c0_i32_1 = arith.constant 0 : i32
    return %c0_i32, %c0_i32_0 : i32, i32
  }
  func.func @transform_5(%arg0: i32) -> (i32, i32) {
    %c0_i32 = arith.constant 0 : i32
    %c0_i32_0 = arith.constant 0 : i32
    %c0_i32_1 = arith.constant 0 : i32
    return %c0_i32, %c0_i32_0 : i32, i32
  }
  func.func @transform_6(%arg0: i32) -> (i32, i32) {
    %c0_i32 = arith.constant 0 : i32
    %c0_i32_0 = arith.constant 0 : i32
    %c0_i32_1 = arith.constant 0 : i32
    return %c0_i32, %c0_i32_0 : i32, i32
  }
  func.func @transform_7(%arg0: i32) -> (i32, i32) {
    %c0_i32 = arith.constant 0 : i32
    %c0_i32_0 = arith.constant 0 : i32
    %c0_i32_1 = arith.constant 0 : i32
    return %c0_i32, %c0_i32_0 : i32, i32
  }
  func.func @transform_8(%arg0: i32) -> (i32, i32) {
    %c0_i32 = arith.constant 0 : i32
    %c0_i32_0 = arith.constant 0 : i32
    %c0_i32_1 = arith.constant 0 : i32
    return %c0_i32, %c0_i32_0 : i32, i32
  }
  func.func @transform_9(%arg0: i32) -> (i32, i32) {
    %c0_i32 = arith.constant 0 : i32
    %c0_i32_0 = arith.constant 0 : i32
    return %arg0, %c0_i32 : i32, i32
  }
}

</mosaic_0001>

<llo_original>
// kernel: critic_forward.1
$region0: #{critic_forward.1}
  #allocation0 [shape = 'u32[]', space=smem, size = 0x4, offset = 0x4, fixed_abs, tag = 'smem constant byte address 0x4 - core index']
  #allocation1 [shape = 'u32[72,128]{1,0:T(1,128)}', space=vmem, size = 0x9000, scoped, tag = 'internal scratch']
  %s0 = inlined_call_operand.vmem [shape: f32[8,16], index: 0, kind: input, shape index: {}]
  %s1 = inlined_call_operand.vmem [shape: f32[8,8], index: 1, kind: input, shape index: {}]
  %s2 = inlined_call_operand.vmem [shape: f32[16,256], index: 2, kind: input, shape index: {}]
  %s3 = inlined_call_operand.vmem [shape: f32[8,256], index: 3, kind: input, shape index: {}]
  %s4 = inlined_call_operand.vmem [shape: f32[1,256], index: 4, kind: input, shape index: {}]
  %s5 = inlined_call_operand.vmem [shape: f32[256,256], index: 5, kind: input, shape index: {}]
  %s6 = inlined_call_operand.vmem [shape: f32[1,256], index: 6, kind: input, shape index: {}]
  %s7 = inlined_call_operand.vmem [shape: f32[256,128], index: 7, kind: input, shape index: {}]
  %s8 = inlined_call_operand.vmem [shape: f32[1,128], index: 8, kind: input, shape index: {}]
  %s9 = inlined_call_operand.vmem [shape: f32[8,128], index: 9, kind: output, shape index: {}]
  %s10 = sld [smem:[#allocation0]]
  $region46: #{critic_forward.1} parent=0
    _
  %s12 = ssub.s32 1, %s10
  %s13 = scalar_select 0, %s12, %s10
  // Predicated region
  $region2: #{critic_forward.1} parent=0 // pred_check
    _
  $region3: #{critic_forward.1} parent=0 // pred_check_branch
    %15 = sbr.rel (0) target = $region5
  $region4: #{critic_forward.1} parent=0 // pred_region
    _
  $region5: #{critic_forward.1} parent=0 // pred_fallthru
    _
  // Predicated region
  $region6: #{critic_forward.1} parent=0 // pred_check
    _
  $region7: #{critic_forward.1} parent=0 // pred_check_branch
    %17 = sbr.rel (0) target = $region9
  $region8: #{critic_forward.1} parent=0 // pred_region
    _
  $region9: #{critic_forward.1} parent=0 // pred_fallthru
    _
  // Predicated region
  $region10: #{critic_forward.1} parent=0 // pred_check
    _
  $region11: #{critic_forward.1} parent=0 // pred_check_branch
    %19 = sbr.rel (0) target = $region13
  $region12: #{critic_forward.1} parent=0 // pred_region
    _
  $region13: #{critic_forward.1} parent=0 // pred_fallthru
    _
  // Predicated region
  $region14: #{critic_forward.1} parent=0 // pred_check
    _
  $region15: #{critic_forward.1} parent=0 // pred_check_branch
    %21 = sbr.rel (0) target = $region17
  $region16: #{critic_forward.1} parent=0 // pred_region
    _
  $region17: #{critic_forward.1} parent=0 // pred_fallthru
    _
  // Predicated region
  $region18: #{critic_forward.1} parent=0 // pred_check
    _
  $region19: #{critic_forward.1} parent=0 // pred_check_branch
    %23 = sbr.rel (0) target = $region21
  $region20: #{critic_forward.1} parent=0 // pred_region
    _
  $region21: #{critic_forward.1} parent=0 // pred_fallthru
    _
  // Predicated region
  $region22: #{critic_forward.1} parent=0 // pred_check
    _
  $region23: #{critic_forward.1} parent=0 // pred_check_branch
    %25 = sbr.rel (0) target = $region25
  $region24: #{critic_forward.1} parent=0 // pred_region
    _
  $region25: #{critic_forward.1} parent=0 // pred_fallthru
    _
  // Predicated region
  $region26: #{critic_forward.1} parent=0 // pred_check
    _
  $region27: #{critic_forward.1} parent=0 // pred_check_branch
    %27 = sbr.rel (0) target = $region29
  $region28: #{critic_forward.1} parent=0 // pred_region
    _
  $region29: #{critic_forward.1} parent=0 // pred_fallthru
    _
  // Predicated region
  $region30: #{critic_forward.1} parent=0 // pred_check
    _
  $region31: #{critic_forward.1} parent=0 // pred_check_branch
    %29 = sbr.rel (0) target = $region33
  $region32: #{critic_forward.1} parent=0 // pred_region
    _
  $region33: #{critic_forward.1} parent=0 // pred_fallthru
    _
  // Predicated region
  $region34: #{critic_forward.1} parent=0 // pred_check
    _
  $region35: #{critic_forward.1} parent=0 // pred_check_branch
    %31 = sbr.rel (0) target = $region37
  $region36: #{critic_forward.1} parent=0 // pred_region
    _
  $region37: #{critic_forward.1} parent=0 // pred_fallthru
    _
  %v32 = vld [vmem:[%s0] sm:$0xff]
  %v33 = vld [vmem:[%s2] sm:$0xff]
  %v34 = vld [vmem:[%s2 + $0x8] sm:$0xff]
  %v35 = vld [vmem:[%s2 + $0x10] sm:$0xff]
  %v36 = vld [vmem:[%s2 + $0x18] sm:$0xff]
  %v37 = vld [vmem:[%s1] sm:$0xff]
  %v38 = vld [vmem:[%s3] sm:$0xff]
  %v39 = vld [vmem:[%s3 + $0x8] sm:$0xff]
  %vm40 = vcmask 64512
  %v42 = vsel %vm40, %v37, 0
  %44 = vmatpush.msra.mxu0 0.0
  %45 = vmatpush.msra.mxu0 0.0
  %46 = vmatpush.msra.mxu0 0.0
  %47 = vmatpush.msra.mxu0 0.0
  %48 = vmatpush.msra.mxu0 0.0
  %49 = vmatpush.msra.mxu0 0.0
  %50 = vmatpush.msra.mxu0 0.0
  %51 = vmatpush.msra.mxu0 0.0
  %52 = vmatpush.msra.mxu0 0.0
  %53 = vmatpush.msra.mxu0 0.0
  %54 = vmatpush.msra.mxu0 0.0
  %55 = vmatpush.msra.mxu0 0.0
  %56 = vmatpush.msra.mxu0 0.0
  %57 = vmatpush.msra.mxu0 0.0
  %58 = vmatpush.msra.mxu0 0.0
  %59 = vmatpush.msra.mxu0 %v38
  %60 = vmatmul.f32.gmra.mxu0 %v42
  %v61 = vpop.f32.mrf.mxu0
  %v62 = vadd.f32 0.0, %v61
  %63 = vdwg.mxu0
  %64 = vmatpush.msra.mxu0 0.0
  %65 = vmatpush.msra.mxu0 0.0
  %66 = vmatpush.msra.mxu0 0.0
  %67 = vmatpush.msra.mxu0 0.0
  %68 = vmatpush.msra.mxu0 0.0
  %69 = vmatpush.msra.mxu0 0.0
  %70 = vmatpush.msra.mxu0 0.0
  %71 = vmatpush.msra.mxu0 0.0
  %72 = vmatpush.msra.mxu0 0.0
  %73 = vmatpush.msra.mxu0 0.0
  %74 = vmatpush.msra.mxu0 0.0
  %75 = vmatpush.msra.mxu0 0.0
  %76 = vmatpush.msra.mxu0 0.0
  %77 = vmatpush.msra.mxu0 0.0
  %78 = vmatpush.msra.mxu0 0.0
  %79 = vmatpush.msra.mxu0 %v39
  %80 = vmatmul.f32.gmra.mxu0 %v42
  %v81 = vpop.f32.mrf.mxu0
  %v82 = vadd.f32 0.0, %v81
  %83 = vdwg.mxu0
  %vm84 = vcmask 130048
  %v86 = vsel %vm84, %v32, 0
  %88 = vmatpush.msra.mxu0 0.0
  %89 = vmatpush.msra.mxu0 0.0
  %90 = vmatpush.msra.mxu0 0.0
  %91 = vmatpush.msra.mxu0 0.0
  %92 = vmatpush.msra.mxu0 0.0
  %93 = vmatpush.msra.mxu0 0.0
  %94 = vmatpush.msra.mxu0 0.0
  %95 = vmatpush.msra.mxu0 0.0
  %96 = vmatpush.msra.mxu0 0.0
  %97 = vmatpush.msra.mxu0 0.0
  %98 = vmatpush.msra.mxu0 0.0
  %99 = vmatpush.msra.mxu0 0.0
  %100 = vmatpush.msra.mxu0 0.0
  %101 = vmatpush.msra.mxu0 0.0
  %102 = vmatpush.msra.mxu0 %v35
  %103 = vmatpush.msra.mxu0 %v33
  %104 = vmatmul.f32.gmra.mxu0 %v86
  %v105 = vpop.f32.mrf.mxu0
  %v106 = vadd.f32 %v62, %v105
  %107 = vdwg.mxu0
  %108 = vmatpush.msra.mxu0 0.0
  %109 = vmatpush.msra.mxu0 0.0
  %110 = vmatpush.msra.mxu0 0.0
  %111 = vmatpush.msra.mxu0 0.0
  %112 = vmatpush.msra.mxu0 0.0
  %113 = vmatpush.msra.mxu0 0.0
  %114 = vmatpush.msra.mxu0 0.0
  %115 = vmatpush.msra.mxu0 0.0
  %116 = vmatpush.msra.mxu0 0.0
  %117 = vmatpush.msra.mxu0 0.0
  %118 = vmatpush.msra.mxu0 0.0
  %119 = vmatpush.msra.mxu0 0.0
  %120 = vmatpush.msra.mxu0 0.0
  %121 = vmatpush.msra.mxu0 0.0
  %122 = vmatpush.msra.mxu0 %v36
  %123 = vmatpush.msra.mxu0 %v34
  %124 = vmatmul.f32.gmra.mxu0 %v86
  %v125 = vpop.f32.mrf.mxu0
  %v126 = vadd.f32 %v82, %v125
  %127 = vdwg.mxu0
  %v128 = vld [vmem:[%s4] sm:$0x3]
  %v130 = vperm.slane %v128, 0
  %v131 = vperm.slane %v128, 1
  %v134 = vadd.f32 %v106, %v130
  %v135 = vadd.f32 %v126, %v131
  %vm136 = vcmp.gt.f32.partialorder %v134, 0.0
  %vm137 = vcmp.gt.f32.partialorder %v135, 0.0
  %v138 = vmin.f32 %v134, 0.0
  %v139 = vmin.f32 %v135, 0.0
  %v140 = vmul.f32 %v138, 1.442695
  %v141 = vpow.pop %v140
  %v142 = vmul.f32 %v139, 1.442695
  %v143 = vpow.pop %v142
  %v144 = vsub.f32 %v141, 1.0
  %v145 = vsub.f32 %v143, 1.0
  %v146 = vsel %vm136, %v134, %v144
  %v147 = vsel %vm137, %v135, %v145
  %v148 = vld [vmem:[%s5] sm:$0xff]
  %v149 = vld [vmem:[%s5 + $0x8] sm:$0xff]
  %v150 = vld [vmem:[%s5 + $0x10] sm:$0xff]
  %v151 = vld [vmem:[%s5 + $0x18] sm:$0xff]
  %v152 = vld [vmem:[%s5 + $0x20] sm:$0xff]
  %v153 = vld [vmem:[%s5 + $0x28] sm:$0xff]
  %v154 = vld [vmem:[%s5 + $0x30] sm:$0xff]
  %v155 = vld [vmem:[%s5 + $0x38] sm:$0xff]
  %v156 = vld [vmem:[%s5 + $0x40] sm:$0xff]
  %v157 = vld [vmem:[%s5 + $0x48] sm:$0xff]
  %v158 = vld [vmem:[%s5 + $0x50] sm:$0xff]
  %v159 = vld [vmem:[%s5 + $0x58] sm:$0xff]
  %v160 = vld [vmem:[%s5 + $0x60] sm:$0xff]
  %v161 = vld [vmem:[%s5 + $0x68] sm:$0xff]
  %v162 = vld [vmem:[%s5 + $0x70] sm:$0xff]
  %v163 = vld [vmem:[%s5 + $0x78] sm:$0xff]
  %v164 = vld [vmem:[%s5 + $0x80] sm:$0xff]
  %v165 = vld [vmem:[%s5 + $0x88] sm:$0xff]
  %v166 = vld [vmem:[%s5 + $0x90] sm:$0xff]
  %v167 = vld [vmem:[%s5 + $0x98] sm:$0xff]
  %v168 = vld [vmem:[%s5 + $0xa0] sm:$0xff]
  %v169 = vld [vmem:[%s5 + $0xa8] sm:$0xff]
  %v170 = vld [vmem:[%s5 + $0xb0] sm:$0xff]
  %v171 = vld [vmem:[%s5 + $0xb8] sm:$0xff]
  %v172 = vld [vmem:[%s5 + $0xc0] sm:$0xff]
  %v173 = vld [vmem:[%s5 + $0xc8] sm:$0xff]
  %v174 = vld [vmem:[%s5 + $0xd0] sm:$0xff]
  %v175 = vld [vmem:[%s5 + $0xd8] sm:$0xff]
  %v176 = vld [vmem:[%s5 + $0xe0] sm:$0xff]
  %v177 = vld [vmem:[%s5 + $0xe8] sm:$0xff]
  %v178 = vld [vmem:[%s5 + $0xf0] sm:$0xff]
  %v179 = vld [vmem:[%s5 + $0xf8] sm:$0xff]
  %v180 = vld [vmem:[%s5 + $0x100] sm:$0xff]
  %v181 = vld [vmem:[%s5 + $0x108] sm:$0xff]
  %v182 = vld [vmem:[%s5 + $0x110] sm:$0xff]
  %v183 = vld [vmem:[%s5 + $0x118] sm:$0xff]
  %v184 = vld [vmem:[%s5 + $0x120] sm:$0xff]
  %v185 = vld [vmem:[%s5 + $0x128] sm:$0xff]
  %v186 = vld [vmem:[%s5 + $0x130] sm:$0xff]
  %v187 = vld [vmem:[%s5 + $0x138] sm:$0xff]
  %v188 = vld [vmem:[%s5 + $0x140] sm:$0xff]
  %v189 = vld [vmem:[%s5 + $0x148] sm:$0xff]
  %v190 = vld [vmem:[%s5 + $0x150] sm:$0xff]
  %v191 = vld [vmem:[%s5 + $0x158] sm:$0xff]
  %v192 = vld [vmem:[%s5 + $0x160] sm:$0xff]
  %v193 = vld [vmem:[%s5 + $0x168] sm:$0xff]
  %v194 = vld [vmem:[%s5 + $0x170] sm:$0xff]
  %v195 = vld [vmem:[%s5 + $0x178] sm:$0xff]
  %v196 = vld [vmem:[%s5 + $0x180] sm:$0xff]
  %v197 = vld [vmem:[%s5 + $0x188] sm:$0xff]
  %v198 = vld [vmem:[%s5 + $0x190] sm:$0xff]
  %v199 = vld [vmem:[%s5 + $0x198] sm:$0xff]
  %v200 = vld [vmem:[%s5 + $0x1a0] sm:$0xff]
  %v201 = vld [vmem:[%s5 + $0x1a8] sm:$0xff]
  %v202 = vld [vmem:[%s5 + $0x1b0] sm:$0xff]
  %v203 = vld [vmem:[%s5 + $0x1b8] sm:$0xff]
  %v204 = vld [vmem:[%s5 + $0x1c0] sm:$0xff]
  %v205 = vld [vmem:[%s5 + $0x1c8] sm:$0xff]
  %v206 = vld [vmem:[%s5 + $0x1d0] sm:$0xff]
  %v207 = vld [vmem:[%s5 + $0x1d8] sm:$0xff]
  %v208 = vld [vmem:[%s5 + $0x1e0] sm:$0xff]
  %v209 = vld [vmem:[%s5 + $0x1e8] sm:$0xff]
  %v210 = vld [vmem:[%s5 + $0x1f0] sm:$0xff]
  %v211 = vld [vmem:[%s5 + $0x1f8] sm:$0xff]
  %v212 = vld [vmem:[%s6] sm:$0x3]
  %v214 = vperm.slane %v212, 0
  %v215 = vperm.slane %v212, 1
  %218 = vmatpush.msra.mxu0 %v178
  %219 = vmatpush.msra.mxu0 %v176
  %220 = vmatpush.msra.mxu0 %v174
  %221 = vmatpush.msra.mxu0 %v172
  %222 = vmatpush.msra.mxu0 %v170
  %223 = vmatpush.msra.mxu0 %v168
  %224 = vmatpush.msra.mxu0 %v166
  %225 = vmatpush.msra.mxu0 %v164
  %226 = vmatpush.msra.mxu0 %v162
  %227 = vmatpush.msra.mxu0 %v160
  %228 = vmatpush.msra.mxu0 %v158
  %229 = vmatpush.msra.mxu0 %v156
  %230 = vmatpush.msra.mxu0 %v154
  %231 = vmatpush.msra.mxu0 %v152
  %232 = vmatpush.msra.mxu0 %v150
  %233 = vmatpush.msra.mxu0 %v148
  %234 = vmatmul.f32.gmra.mxu0 %v146
  %v235 = vpop.f32.mrf.mxu0
  %v236 = vadd.f32 %v214, %v235
  %237 = vdwg.mxu0
  %238 = vmatpush.msra.mxu0 %v210
  %239 = vmatpush.msra.mxu0 %v208
  %240 = vmatpush.msra.mxu0 %v206
  %241 = vmatpush.msra.mxu0 %v204
  %242 = vmatpush.msra.mxu0 %v202
  %243 = vmatpush.msra.mxu0 %v200
  %244 = vmatpush.msra.mxu0 %v198
  %245 = vmatpush.msra.mxu0 %v196
  %246 = vmatpush.msra.mxu0 %v194
  %247 = vmatpush.msra.mxu0 %v192
  %248 = vmatpush.msra.mxu0 %v190
  %249 = vmatpush.msra.mxu0 %v188
  %250 = vmatpush.msra.mxu0 %v186
  %251 = vmatpush.msra.mxu0 %v184
  %252 = vmatpush.msra.mxu0 %v182
  %253 = vmatpush.msra.mxu0 %v180
  %254 = vmatmul.f32.gmra.mxu0 %v147
  %v255 = vpop.f32.mrf.mxu0
  %v256 = vadd.f32 %v236, %v255
  %257 = vdwg.mxu0
  %258 = vmatpush.msra.mxu0 %v179
  %259 = vmatpush.msra.mxu0 %v177
  %260 = vmatpush.msra.mxu0 %v175
  %261 = vmatpush.msra.mxu0 %v173
  %262 = vmatpush.msra.mxu0 %v171
  %263 = vmatpush.msra.mxu0 %v169
  %264 = vmatpush.msra.mxu0 %v167
  %265 = vmatpush.msra.mxu0 %v165
  %266 = vmatpush.msra.mxu0 %v163
  %267 = vmatpush.msra.mxu0 %v161
  %268 = vmatpush.msra.mxu0 %v159
  %269 = vmatpush.msra.mxu0 %v157
  %270 = vmatpush.msra.mxu0 %v155
  %271 = vmatpush.msra.mxu0 %v153
  %272 = vmatpush.msra.mxu0 %v151
  %273 = vmatpush.msra.mxu0 %v149
  %274 = vmatmul.f32.gmra.mxu0 %v146
  %v275 = vpop.f32.mrf.mxu0
  %v276 = vadd.f32 %v215, %v275
  %277 = vdwg.mxu0
  %278 = vmatpush.msra.mxu0 %v211
  %279 = vmatpush.msra.mxu0 %v209
  %280 = vmatpush.msra.mxu0 %v207
  %281 = vmatpush.msra.mxu0 %v205
  %282 = vmatpush.msra.mxu0 %v203
  %283 = vmatpush.msra.mxu0 %v201
  %284 = vmatpush.msra.mxu0 %v199
  %285 = vmatpush.msra.mxu0 %v197
  %286 = vmatpush.msra.mxu0 %v195
  %287 = vmatpush.msra.mxu0 %v193
  %288 = vmatpush.msra.mxu0 %v191
  %289 = vmatpush.msra.mxu0 %v189
  %290 = vmatpush.msra.mxu0 %v187
  %291 = vmatpush.msra.mxu0 %v185
  %292 = vmatpush.msra.mxu0 %v183
  %293 = vmatpush.msra.mxu0 %v181
  %294 = vmatmul.f32.gmra.mxu0 %v147
  %v295 = vpop.f32.mrf.mxu0
  %v296 = vadd.f32 %v276, %v295
  %297 = vdwg.mxu0
  %vm298 = vcmp.gt.f32.partialorder %v256, 0.0
  %vm299 = vcmp.gt.f32.partialorder %v296, 0.0
  %v300 = vmin.f32 %v256, 0.0
  %v301 = vmin.f32 %v296, 0.0
  %v302 = vmul.f32 %v300, 1.442695
  %v303 = vpow.pop %v302
  %v304 = vmul.f32 %v301, 1.442695
  %v305 = vpow.pop %v304
  %v306 = vsub.f32 %v303, 1.0
  %v307 = vsub.f32 %v305, 1.0
  %v308 = vsel %vm298, %v256, %v306
  %v309 = vsel %vm299, %v296, %v307
  %v310 = vld [vmem:[%s7] sm:$0xff]
  %v311 = vld [vmem:[%s7 + $0x8] sm:$0xff]
  %v312 = vld [vmem:[%s7 + $0x10] sm:$0xff]
  %v313 = vld [vmem:[%s7 + $0x18] sm:$0xff]
  %v314 = vld [vmem:[%s7 + $0x20] sm:$0xff]
  %v315 = vld [vmem:[%s7 + $0x28] sm:$0xff]
  %v316 = vld [vmem:[%s7 + $0x30] sm:$0xff]
  %v317 = vld [vmem:[%s7 + $0x38] sm:$0xff]
  %v318 = vld [vmem:[%s7 + $0x40] sm:$0xff]
  %v319 = vld [vmem:[%s7 + $0x48] sm:$0xff]
  %v320 = vld [vmem:[%s7 + $0x50] sm:$0xff]
  %v321 = vld [vmem:[%s7 + $0x58] sm:$0xff]
  %v322 = vld [vmem:[%s7 + $0x60] sm:$0xff]
  %v323 = vld [vmem:[%s7 + $0x68] sm:$0xff]
  %v324 = vld [vmem:[%s7 + $0x70] sm:$0xff]
  %v325 = vld [vmem:[%s7 + $0x78] sm:$0xff]
  %v326 = vld [vmem:[%s7 + $0x80] sm:$0xff]
  %v327 = vld [vmem:[%s7 + $0x88] sm:$0xff]
  %v328 = vld [vmem:[%s7 + $0x90] sm:$0xff]
  %v329 = vld [vmem:[%s7 + $0x98] sm:$0xff]
  %v330 = vld [vmem:[%s7 + $0xa0] sm:$0xff]
  %v331 = vld [vmem:[%s7 + $0xa8] sm:$0xff]
  %v332 = vld [vmem:[%s7 + $0xb0] sm:$0xff]
  %v333 = vld [vmem:[%s7 + $0xb8] sm:$0xff]
  %v334 = vld [vmem:[%s7 + $0xc0] sm:$0xff]
  %v335 = vld [vmem:[%s7 + $0xc8] sm:$0xff]
  %v336 = vld [vmem:[%s7 + $0xd0] sm:$0xff]
  %v337 = vld [vmem:[%s7 + $0xd8] sm:$0xff]
  %v338 = vld [vmem:[%s7 + $0xe0] sm:$0xff]
  %v339 = vld [vmem:[%s7 + $0xe8] sm:$0xff]
  %v340 = vld [vmem:[%s7 + $0xf0] sm:$0xff]
  %v341 = vld [vmem:[%s7 + $0xf8] sm:$0xff]
  %v342 = vld [vmem:[%s8] sm:$0x1]
  %v344 = vperm.slane %v342, 0
  %346 = vmatpush.msra.mxu0 %v325
  %347 = vmatpush.msra.mxu0 %v324
  %348 = vmatpush.msra.mxu0 %v323
  %349 = vmatpush.msra.mxu0 %v322
  %350 = vmatpush.msra.mxu0 %v321
  %351 = vmatpush.msra.mxu0 %v320
  %352 = vmatpush.msra.mxu0 %v319
  %353 = vmatpush.msra.mxu0 %v318
  %354 = vmatpush.msra.mxu0 %v317
  %355 = vmatpush.msra.mxu0 %v316
  %356 = vmatpush.msra.mxu0 %v315
  %357 = vmatpush.msra.mxu0 %v314
  %358 = vmatpush.msra.mxu0 %v313
  %359 = vmatpush.msra.mxu0 %v312
  %360 = vmatpush.msra.mxu0 %v311
  %361 = vmatpush.msra.mxu0 %v310
  %362 = vmatmul.f32.gmra.mxu0 %v308
  %v363 = vpop.f32.mrf.mxu0
  %v364 = vadd.f32 %v344, %v363
  %365 = vdwg.mxu0
  %366 = vmatpush.msra.mxu0 %v341
  %367 = vmatpush.msra.mxu0 %v340
  %368 = vmatpush.msra.mxu0 %v339
  %369 = vmatpush.msra.mxu0 %v338
  %370 = vmatpush.msra.mxu0 %v337
  %371 = vmatpush.msra.mxu0 %v336
  %372 = vmatpush.msra.mxu0 %v335
  %373 = vmatpush.msra.mxu0 %v334
  %374 = vmatpush.msra.mxu0 %v333
  %375 = vmatpush.msra.mxu0 %v332
  %376 = vmatpush.msra.mxu0 %v331
  %377 = vmatpush.msra.mxu0 %v330
  %378 = vmatpush.msra.mxu0 %v329
  %379 = vmatpush.msra.mxu0 %v328
  %380 = vmatpush.msra.mxu0 %v327
  %381 = vmatpush.msra.mxu0 %v326
  %382 = vmatmul.f32.gmra.mxu0 %v309
  %v383 = vpop.f32.mrf.mxu0
  %v384 = vadd.f32 %v364, %v383
  %385 = vdwg.mxu0
  %386 = vst [vmem:[%s9] sm:$0xff] %v384
  // Predicated region
  $region38: #{critic_forward.1} parent=0 // pred_check
    _
  $region39: #{critic_forward.1} parent=0 // pred_check_branch
    %388 = sbr.rel (0) target = $region41
  $region40: #{critic_forward.1} parent=0 // pred_region
    _
  $region41: #{critic_forward.1} parent=0 // pred_fallthru
    _
  // Predicated region
  $region42: #{critic_forward.1} parent=0 // pred_check
    _
  $region43: #{critic_forward.1} parent=0 // pred_check_branch
    %390 = sbr.rel (0) target = $region45
  $region44: #{critic_forward.1} parent=0 // pred_region
    _
  $region45: #{critic_forward.1} parent=0 // pred_fallthru
    _

</llo_original>
